<compile_context>
chip_gen: v7x
topology: tpu7x:2x2x1
jax: 0.10.0
libtpu: 0.0.40
codegen_flags: <defaults>
</compile_context>

<pallas_src>
import functools

import numpy as np
import jax
import jax.numpy as jnp
from jax import lax
from jax.experimental import pallas as pl
from jax.experimental.pallas import tpu as pltpu

LANES = 128
SUBLANES = 8


def _huber_partials_kernel(pred_ref, targ_ref, out_ref, *,
                           delta: float, block_rows: int, csub: int,
                           full_rows: int, rem_lane: int,
                           needs_mask: bool, unroll: int):
    """Per-tile partial sums for the two Huber branches.

    pred_ref/targ_ref: (block_rows, 128) tiles of the flattened inputs (native dtype).
    out_ref: (3, 8, 128) f32 lane-dense partials:
       [0] sum of r^2 over valid elements with r <= delta
       [1] count of valid elements with r <= delta
       [2] sum of r   over valid elements with r >  delta
    """
    i = pl.program_id(0)
    n_chunks = block_rows // csub
    acc_shape = (csub, LANES)

    def fold(acc):
        # (csub, 128) -> (8, 128); csub is 8 (f32) or 16 (bf16/f16).
        if csub == SUBLANES:
            return acc
        return jnp.sum(acc.reshape(csub // SUBLANES, SUBLANES, LANES), axis=0)

    def run(masked: bool):
        if masked:
            # Hoisted loop invariants (broadcasts are not CSE'd inside loops).
            row_iota = lax.broadcasted_iota(jnp.int32, acc_shape, 0)
            lane_iota = lax.broadcasted_iota(jnp.int32, acc_shape, 1)
            blk_row0 = i * block_rows

        def body(c, carry):
            ss, cs, sl = carry
            start = pl.multiple_of(c * csub, csub)
            p = pred_ref[pl.ds(start, csub), :].astype(jnp.float32)
            t = targ_ref[pl.ds(start, csub), :].astype(jnp.float32)
            r = jnp.abs(p - t)
            zero = jnp.zeros_like(r)
            small = r <= delta
            if masked:
                # Row/lane compare (int32-safe, no flat element index).
                grow = blk_row0 + start + row_iota
                valid = jnp.logical_or(
                    grow < full_rows,
                    jnp.logical_and(grow == full_rows, lane_iota < rem_lane))
                large = jnp.logical_and(valid, jnp.logical_not(small))
                small = jnp.logical_and(valid, small)
                sl = sl + jnp.where(large, r, zero)
            else:
                sl = sl + jnp.where(small, zero, r)
            ss = ss + jnp.where(small, r * r, zero)
            cs = cs + small.astype(jnp.float32)
            return ss, cs, sl

        init = (jnp.zeros(acc_shape, jnp.float32),
                jnp.zeros(acc_shape, jnp.float32),
                jnp.zeros(acc_shape, jnp.float32))
        ss, cs, sl = lax.fori_loop(0, n_chunks, body, init, unroll=unroll)
        out_ref[0] = fold(ss)
        out_ref[1] = fold(cs)
        out_ref[2] = fold(sl)

    if needs_mask:
        last = i == pl.num_programs(0) - 1

        @pl.when(jnp.logical_not(last))
        def _():
            run(masked=False)

        @pl.when(last)
        def _():
            run(masked=True)
    else:
        run(masked=False)


def huber_loss(pred: jnp.ndarray, target: jnp.ndarray,
               delta: float = 0.5, block_rows: int = 2048,
               unroll: int = 8) -> jnp.ndarray:
    """Pallas-TPU HuberLoss forward matching the PyTorch module (any input shape)."""
    native = (jnp.float32, jnp.bfloat16, jnp.float16)
    if (pred.dtype != target.dtype
            or not any(pred.dtype == jnp.dtype(d) for d in native)):
        pred = pred.astype(jnp.float32)
        target = target.astype(jnp.float32)

    itemsize = jnp.dtype(pred.dtype).itemsize
    csub = SUBLANES * max(1, 4 // itemsize)   # 8 for f32, 16 for bf16/f16

    p = pred.reshape(-1)
    t = target.reshape(-1)
    total = int(p.shape[0])
    if total == 0:
        return jnp.float32(0.0)

    rows = (total + LANES - 1) // LANES
    pad = rows * LANES - total
    needs_pad = pad > 0
    if needs_pad:
        # Pad only to the next multiple of 128; fused into the operand DMA below.
        p = jnp.pad(p, (0, pad))
        t = jnp.pad(t, (0, pad))
    p2 = p.reshape(rows, LANES)
    t2 = t.reshape(rows, LANES)

    # Row-tile size: biggest that does not exceed the data, multiple of csub sublanes.
    br = min(int(block_rows), ((rows + csub - 1) // csub) * csub)
    br = max(br, csub)
    br = ((br + csub - 1) // csub) * csub
    g = (rows + br - 1) // br                       # last block may be partial
    needs_mask = (total % (br * LANES)) != 0        # any padding / garbage in last block
    n_chunks = br // csub
    unroll = max(1, min(int(unroll), n_chunks))

    kernel = functools.partial(
        _huber_partials_kernel, delta=float(delta), block_rows=br, csub=csub,
        full_rows=total // LANES, rem_lane=total % LANES,
        needs_mask=needs_mask, unroll=unroll)

    in_spec = pl.BlockSpec((br, LANES), lambda i: (i, 0))
    out_spec = pl.BlockSpec((None, 3, SUBLANES, LANES), lambda i: (i, 0, 0, 0))

    partials = pl.pallas_call(
        kernel,
        out_shape=jax.ShapeDtypeStruct((g, 3, SUBLANES, LANES), jnp.float32),
        grid=(g,),
        in_specs=[in_spec, in_spec],
        out_specs=out_spec,
        compiler_params=pltpu.CompilerParams(
            dimension_semantics=("parallel",),
            vmem_limit_bytes=32 * 1024 * 1024,
            allow_input_fusion=[0, 1] if needs_pad else None),
    )(p2, t2)

    # Tiny final reduction + data-dependent branch logic in XLA.
    sums = jnp.sum(partials, axis=(0, 2, 3))        # (3,)
    sum_sq_small = sums[0]
    n_small = sums[1]
    sum_large = sums[2]
    n_large = jnp.float32(total) - n_small          # counts are complementary

    d = jnp.float32(delta)
    small_term = jnp.where(
        n_small > 0.0, 0.5 * sum_sq_small / jnp.maximum(n_small, 1.0), 0.0)
    large_term = jnp.where(
        n_large > 0.0, sum_large / jnp.maximum(n_large, 1.0) * d - 0.5 * d * d, 0.0)
    return small_term + large_term


def huber_loss_reference(pred, target, delta: float = 0.5):
    """Pure-JAX reference reproducing the PyTorch module's conditional-subset means."""
    r = jnp.abs(pred.astype(jnp.float32) - target.astype(jnp.float32)).reshape(-1)
    small = r <= delta
    large = r > delta
    n_small = jnp.sum(small.astype(jnp.float32))
    n_large = jnp.sum(large.astype(jnp.float32))
    small_term = jnp.where(
        n_small > 0.0,
        0.5 * jnp.sum(jnp.where(small, r * r, 0.0)) / jnp.maximum(n_small, 1.0),
        0.0)
    large_term = jnp.where(
        n_large > 0.0,
        jnp.sum(jnp.where(large, r, 0.0)) / jnp.maximum(n_large, 1.0) * delta
        - 0.5 * delta ** 2,
        0.0)
    return small_term + large_term


if __name__ == "__main__":
    key = jax.random.PRNGKey(0)
    k1, k2 = jax.random.split(key)
    N, C, H, W = 2, 4, 16, 16
    pred = jax.random.uniform(k1, (N, C, H, W), dtype=jnp.float32)
    target = jax.random.uniform(k2, (N, C, H, W), dtype=jnp.float32)

    loss = jax.block_until_ready(huber_loss(pred, target, delta=0.5))
    loss_ref = jax.block_until_ready(huber_loss_reference(pred, target, delta=0.5))

    assert np.isfinite(np.asarray(loss)), "non-finite loss"
    np.testing.assert_allclose(np.asarray(loss), np.asarray(loss_ref),
                               rtol=1e-5, atol=1e-6)

    # Also exercise an odd-sized (tail-masked, padded-and-fused) case and bf16 inputs.
    M = 5 * 128 + 37
    pb = jax.random.uniform(k1, (M,), dtype=jnp.float32)
    tb = jax.random.uniform(k2, (M,), dtype=jnp.float32)
    l2 = jax.block_until_ready(huber_loss(pb, tb, delta=0.5, block_rows=16))
    np.testing.assert_allclose(np.asarray(l2),
                               np.asarray(huber_loss_reference(pb, tb, 0.5)),
                               rtol=1e-5, atol=1e-6)
    l3 = jax.block_until_ready(
        huber_loss(pred.astype(jnp.bfloat16), target.astype(jnp.bfloat16), delta=0.5))
    np.testing.assert_allclose(
        np.asarray(l3),
        np.asarray(huber_loss_reference(pred.astype(jnp.bfloat16),
                                        target.astype(jnp.bfloat16), 0.5)),
        rtol=1e-2, atol=1e-3)

    print("KERNEL_OK")
</pallas_src>

<mosaic_0001>
module attributes {stable_mosaic.version = 11 : i64} {
  func.func @_huber_partials_kernel(%arg0: i32, %arg1: memref<16x128xf32, #tpu.memory_space<vmem>>, %arg2: memref<16x128xf32, #tpu.memory_space<vmem>>, %arg3: memref<1x3x8x128xf32, #tpu.memory_space<vmem>>) attributes {dimension_semantics = [#tpu.dimension_semantics<parallel>], iteration_bounds = array<i64: 1>, scalar_prefetch = 0 : i64, scratch_operands = 0 : i64, tpu.core_type = #tpu.core_type<tc>, window_params = [{transform_indices = @transform_0, window_bounds = array<i64: 16, 128>}, {transform_indices = @transform_1, window_bounds = array<i64: 16, 128>}, {transform_indices = @transform_2, window_bounds = array<i64: 1, 3, 8, 128>}]} {
    %cst = arith.constant 0.000000e+00 : f32
    %0 = vector.broadcast %cst : f32 to vector<8x128xf32>
    %cst_0 = arith.constant 0.000000e+00 : f32
    %1 = vector.broadcast %cst_0 : f32 to vector<8x128xf32>
    %cst_1 = arith.constant 0.000000e+00 : f32
    %2 = vector.broadcast %cst_1 : f32 to vector<8x128xf32>
    %c0_i32 = arith.constant 0 : i32
    %c8_i32 = arith.constant 8 : i32
    %3 = arith.muli %c0_i32, %c8_i32 : i32
    %4 = tpu.assume_multiple %3, 8 : i32
    %5 = arith.index_cast %4 : i32 to index
    %c0 = arith.constant 0 : index
    %6 = vector.load %arg1[%5, %c0] : memref<16x128xf32, #tpu.memory_space<vmem>>, vector<8x128xf32>
    %7 = arith.index_cast %4 : i32 to index
    %c0_2 = arith.constant 0 : index
    %8 = vector.load %arg2[%7, %c0_2] : memref<16x128xf32, #tpu.memory_space<vmem>>, vector<8x128xf32>
    %9 = arith.subf %6, %8 : vector<8x128xf32>
    %10 = math.absf %9 : vector<8x128xf32>
    %cst_3 = arith.constant 0.000000e+00 : f32
    %11 = vector.broadcast %cst_3 : f32 to vector<8x128xf32>
    %cst_4 = arith.constant 5.000000e-01 : f32
    %12 = vector.broadcast %cst_4 : f32 to vector<8x128xf32>
    %13 = arith.cmpf ole, %10, %12 : vector<8x128xf32>
    %14 = arith.select %13, %11, %10 : vector<8x128xi1>, vector<8x128xf32>
    %15 = arith.addf %2, %14 : vector<8x128xf32>
    %16 = arith.mulf %10, %10 : vector<8x128xf32>
    %17 = arith.select %13, %16, %11 : vector<8x128xi1>, vector<8x128xf32>
    %18 = arith.addf %0, %17 : vector<8x128xf32>
    %19 = arith.extui %13 : vector<8x128xi1> to vector<8x128xi32>
    %20 = arith.sitofp %19 : vector<8x128xi32> to vector<8x128xf32>
    %21 = arith.addf %1, %20 : vector<8x128xf32>
    %c1_i32 = arith.constant 1 : i32
    %c8_i32_5 = arith.constant 8 : i32
    %22 = arith.muli %c1_i32, %c8_i32_5 : i32
    %23 = tpu.assume_multiple %22, 8 : i32
    %24 = arith.index_cast %23 : i32 to index
    %c0_6 = arith.constant 0 : index
    %25 = vector.load %arg1[%24, %c0_6] : memref<16x128xf32, #tpu.memory_space<vmem>>, vector<8x128xf32>
    %26 = arith.index_cast %23 : i32 to index
    %c0_7 = arith.constant 0 : index
    %27 = vector.load %arg2[%26, %c0_7] : memref<16x128xf32, #tpu.memory_space<vmem>>, vector<8x128xf32>
    %28 = arith.subf %25, %27 : vector<8x128xf32>
    %29 = math.absf %28 : vector<8x128xf32>
    %cst_8 = arith.constant 0.000000e+00 : f32
    %30 = vector.broadcast %cst_8 : f32 to vector<8x128xf32>
    %cst_9 = arith.constant 5.000000e-01 : f32
    %31 = vector.broadcast %cst_9 : f32 to vector<8x128xf32>
    %32 = arith.cmpf ole, %29, %31 : vector<8x128xf32>
    %33 = arith.select %32, %30, %29 : vector<8x128xi1>, vector<8x128xf32>
    %34 = arith.addf %15, %33 : vector<8x128xf32>
    %35 = arith.mulf %29, %29 : vector<8x128xf32>
    %36 = arith.select %32, %35, %30 : vector<8x128xi1>, vector<8x128xf32>
    %37 = arith.addf %18, %36 : vector<8x128xf32>
    %38 = arith.extui %32 : vector<8x128xi1> to vector<8x128xi32>
    %39 = arith.sitofp %38 : vector<8x128xi32> to vector<8x128xf32>
    %40 = arith.addf %21, %39 : vector<8x128xf32>
    %c2_i32 = arith.constant 2 : i32
    %c0_10 = arith.constant 0 : index
    %c0_11 = arith.constant 0 : index
    %c0_12 = arith.constant 0 : index
    %c0_13 = arith.constant 0 : index
    %41 = vector.load %arg3[%c0_10, %c0_11, %c0_12, %c0_13] : memref<1x3x8x128xf32, #tpu.memory_space<vmem>>, vector<1x1x8x128xf32>
    %42 = vector.shape_cast %41 : vector<1x1x8x128xf32> to vector<8x128xf32>
    %43 = vector.shape_cast %37 : vector<8x128xf32> to vector<1x1x8x128xf32>
    tpu.vector_store %arg3[%c0_10, %c0_11, %c0_12, %c0_13], %43 {strides = array<i32>} : memref<1x3x8x128xf32, #tpu.memory_space<vmem>>, vector<1x1x8x128xf32>,
    %c0_14 = arith.constant 0 : index
    %c1 = arith.constant 1 : index
    %c0_15 = arith.constant 0 : index
    %c0_16 = arith.constant 0 : index
    %44 = vector.load %arg3[%c0_14, %c1, %c0_15, %c0_16] : memref<1x3x8x128xf32, #tpu.memory_space<vmem>>, vector<1x1x8x128xf32>
    %45 = vector.shape_cast %44 : vector<1x1x8x128xf32> to vector<8x128xf32>
    %46 = vector.shape_cast %40 : vector<8x128xf32> to vector<1x1x8x128xf32>
    tpu.vector_store %arg3[%c0_14, %c1, %c0_15, %c0_16], %46 {strides = array<i32>} : memref<1x3x8x128xf32, #tpu.memory_space<vmem>>, vector<1x1x8x128xf32>,
    %c0_17 = arith.constant 0 : index
    %c2 = arith.constant 2 : index
    %c0_18 = arith.constant 0 : index
    %c0_19 = arith.constant 0 : index
    %47 = vector.load %arg3[%c0_17, %c2, %c0_18, %c0_19] : memref<1x3x8x128xf32, #tpu.memory_space<vmem>>, vector<1x1x8x128xf32>
    %48 = vector.shape_cast %47 : vector<1x1x8x128xf32> to vector<8x128xf32>
    %49 = vector.shape_cast %34 : vector<8x128xf32> to vector<1x1x8x128xf32>
    tpu.vector_store %arg3[%c0_17, %c2, %c0_18, %c0_19], %49 {strides = array<i32>} : memref<1x3x8x128xf32, #tpu.memory_space<vmem>>, vector<1x1x8x128xf32>,
    return
  }
  func.func @transform_0(%arg0: i32) -> (i32, i32) {
    %c0_i32 = arith.constant 0 : i32
    %c0_i32_0 = arith.constant 0 : i32
    return %arg0, %c0_i32 : i32, i32
  }
  func.func @transform_1(%arg0: i32) -> (i32, i32) {
    %c0_i32 = arith.constant 0 : i32
    %c0_i32_0 = arith.constant 0 : i32
    return %arg0, %c0_i32 : i32, i32
  }
  func.func @transform_2(%arg0: i32) -> (i32, i32, i32, i32) {
    %c0_i32 = arith.constant 0 : i32
    %c0_i32_0 = arith.constant 0 : i32
    %c0_i32_1 = arith.constant 0 : i32
    %c0_i32_2 = arith.constant 0 : i32
    return %arg0, %c0_i32, %c0_i32_0, %c0_i32_1 : i32, i32, i32, i32
  }
}

</mosaic_0001>

<llo_original>
// kernel: tpu_custom_call.1
$region0: #{tpu_custom_call.1}
  #allocation0 [shape = 'u32[]', space=smem, size = 0x4, offset = 0x4, fixed_abs, tag = 'smem constant byte address 0x4 - core index']
  #allocation1 [shape = 'u32[144,128]{1,0:T(1,128)}', space=vmem, size = 0x12000, scoped, tag = 'internal scratch']
  %s0 = inlined_call_operand.hbm [shape: f32[16,128], index: 0, kind: input, shape index: {}]
  %s1 = inlined_call_operand.hbm [shape: f32[16,128], index: 1, kind: input, shape index: {}]
  %s2 = inlined_call_operand.hbm [shape: f32[1,3,8,128], index: 2, kind: output, shape index: {}]
  %s3 = sld [smem:[#allocation0]]
  $region26: #{tpu_custom_call.1} parent=0
    _
  %s5 = ssub.s32 1, %s3
  %s6 = scalar_select 0, %s5, %s3
  $region1: #{tpu_custom_call.1} parent=0
    #allocation2 [shape = 'u8[8192]{0}', space=vmem, size = 0x2000, scoped, tag = 'input window, operand 0, single buffered']
    #allocation3 [shape = 's32[1]{0}', space=sflag, size = 0x4, scoped, tag = 'scoped memory for tpu_custom_call.1']
    #allocation4 [shape = 's32[1]{0}', space=sflag, size = 0x4, scoped, tag = 'scoped memory for tpu_custom_call.1']
    #allocation5 [shape = 'u8[8192]{0}', space=vmem, size = 0x2000, scoped, tag = 'input window, operand 1, single buffered']
    #allocation6 [shape = 's32[1]{0}', space=sflag, size = 0x4, scoped, tag = 'scoped memory for tpu_custom_call.1']
    #allocation7 [shape = 'u8[12288]{0}', space=vmem, size = 0x3000, scoped, tag = 'output window, operand 0, single buffered']
    %7 = vsyncpa [#allocation3], 0
    %8 = vsyncpa [#allocation6], 0
    %9 = vsyncpa [#allocation4], 0
    // Predicated region
    $region2: #{tpu_custom_call.1} parent=1 // pred_check
      _
    $region3: #{tpu_custom_call.1} parent=1 // pred_check_branch
      %11 = sbr.rel (0) target = $region5
    $region4: #{tpu_custom_call.1} parent=1 // pred_region
      %s13 = ssub.s32 256, 256
      %14 = vsyncadd [#allocation3], %s13
      %s15 = sshll.u32 [#allocation2], 4
      %s16 = int_to_ptr.vmem [resolvable:$true] %s15
      %21 = dma.hbm_to_vmem [thread:$0]  %s0, 256, %s16, [#allocation3], 128, 128, 8
    $region5: #{tpu_custom_call.1} parent=1 // pred_fallthru
      _
    // Predicated region
    $region6: #{tpu_custom_call.1} parent=1 // pred_check
      _
    $region7: #{tpu_custom_call.1} parent=1 // pred_check_branch
      %23 = sbr.rel (0) target = $region9
    $region8: #{tpu_custom_call.1} parent=1 // pred_region
      %s25 = ssub.s32 256, 256
      %26 = vsyncadd [#allocation6], %s25
      %s27 = sshll.u32 [#allocation5], 4
      %s28 = int_to_ptr.vmem [resolvable:$true] %s27
      %33 = dma.hbm_to_vmem [thread:$0]  %s1, 256, %s28, [#allocation6], 128, 128, 8
    $region9: #{tpu_custom_call.1} parent=1 // pred_fallthru
      _
    // Predicated region
    $region10: #{tpu_custom_call.1} parent=1 // pred_check
      _
    $region11: #{tpu_custom_call.1} parent=1 // pred_check_branch
      %35 = sbr.rel (0) target = $region13
    $region12: #{tpu_custom_call.1} parent=1 // pred_region
      %36 = dma.done [#allocation3], 256
    $region13: #{tpu_custom_call.1} parent=1 // pred_fallthru
      _
    // Predicated region
    $region14: #{tpu_custom_call.1} parent=1 // pred_check
      _
    $region15: #{tpu_custom_call.1} parent=1 // pred_check_branch
      %38 = sbr.rel (0) target = $region17
    $region16: #{tpu_custom_call.1} parent=1 // pred_region
      %39 = dma.done [#allocation6], 256
    $region17: #{tpu_custom_call.1} parent=1 // pred_fallthru
      _
    %v40 = vld [vmem:[#allocation2] sm:$0xff]
    %v41 = vld [vmem:[#allocation5] sm:$0xff]
    %v42 = vsub.f32 %v40, %v41
    %v43 = vand.u32 2147483647, %v42
    %vm44 = vcmp.le.f32.partialorder %v43, 0.5
    %v45 = vsel %vm44, 0.0, %v43
    %v46 = vadd.f32 %v45, 0.0
    %v47 = vmul.f32 %v43, %v43
    %v48 = vsel %vm44, %v47, 0.0
    %v49 = vadd.f32 %v48, 0.0
    %v50 = vsel %vm44, 1, 0
    %v51 = vcvt.s32.f32 %v50
    %v52 = vadd.f32 %v51, 0.0
    %s53 = scalar_lea.vmem [#allocation2], 8
    %v54 = vld [vmem:[%s53] sm:$0xff]
    %s55 = scalar_lea.vmem [#allocation5], 8
    %v56 = vld [vmem:[%s55] sm:$0xff]
    %v57 = vsub.f32 %v54, %v56
    %v58 = vand.u32 2147483647, %v57
    %vm59 = vcmp.le.f32.partialorder %v58, 0.5
    %v60 = vsel %vm59, 0.0, %v58
    %v61 = vadd.f32 %v46, %v60
    %v62 = vmul.f32 %v58, %v58
    %v63 = vsel %vm59, %v62, 0.0
    %v64 = vadd.f32 %v49, %v63
    %v65 = vsel %vm59, 1, 0
    %v66 = vcvt.s32.f32 %v65
    %v67 = vadd.f32 %v52, %v66
    %68 = vst [vmem:[#allocation7] sm:$0xff] %v64
    %s69 = scalar_lea.vmem [#allocation7], 8
    %70 = vst [vmem:[%s69] sm:$0xff] %v67
    %s71 = scalar_lea.vmem [#allocation7], 16
    %72 = vst [vmem:[%s71] sm:$0xff] %v61
    // Predicated region
    $region18: #{tpu_custom_call.1} parent=1 // pred_check
      _
    $region19: #{tpu_custom_call.1} parent=1 // pred_check_branch
      %74 = sbr.rel (0) target = $region21
    $region20: #{tpu_custom_call.1} parent=1 // pred_region
      %s76 = ssub.s32 384, 384
      %77 = vsyncadd [#allocation4], %s76
      %s78 = sshll.u32 [#allocation7], 4
      %s79 = int_to_ptr.vmem [resolvable:$true] %s78
      %84 = dma.vmem_to_hbm [thread:$0]  %s79, 384, %s2, [#allocation4], 128, 128, 8
    $region21: #{tpu_custom_call.1} parent=1 // pred_fallthru
      _
    // Predicated region
    $region22: #{tpu_custom_call.1} parent=1 // pred_check
      _
    $region23: #{tpu_custom_call.1} parent=1 // pred_check_branch
      %86 = sbr.rel (0) target = $region25
    $region24: #{tpu_custom_call.1} parent=1 // pred_region
      %87 = dma.done [#allocation4], 384
    $region25: #{tpu_custom_call.1} parent=1 // pred_fallthru
      _
    %88 = vsyncpa [#allocation3], 1
    %89 = vsyncpa [#allocation6], 1
    %90 = vsyncpa [#allocation4], 1

</llo_original>
